<compile_context>
chip_gen: v6e
topology: v6e:2x2x1
jax: 0.10.0
libtpu: 0.0.40
codegen_flags: <defaults>
</compile_context>

<pallas_src>
import jax
import jax.numpy as jnp
from jax.experimental import pallas as pl
from jax.experimental.pallas import tpu as pltpu


_K_PACK = 8  # packed contraction dim: [var, time, val, 0, 0, 0, 0, 0]


def _init_triplet_kernel(x_ref, w_ref, b_ref, o_ref):
    # x_ref: (tm, 8); w_ref: (8, E) resident; b_ref: (1, E) f32 resident;
    # o_ref: (tm, E).  Accumulate in f32 on the MXU, add bias in f32, cast once.
    acc = jnp.dot(x_ref[...], w_ref[...], preferred_element_type=jnp.float32)
    o_ref[...] = (acc + b_ref[...]).astype(o_ref.dtype)


def init_triplet(var, time, val,
                 w_var, b_var, w_time, b_time, w_val, b_val,
                 *, tile_m=2048, out_dtype=None,
                 vmem_budget_bytes=28 * 1024 * 1024):
    """var, time, val: (B, L, 1).  w_*: (E, 1), b_*: (E,) as in nn.Linear(1, E).

    out_dtype: pass jnp.bfloat16 to halve output HBM traffic (the kernel is
    write-bound); defaults to var.dtype.  Accumulation and bias stay f32.
    """
    B, L, one = var.shape
    assert one == 1, "trailing dim must be 1 (Linear(1, E) inputs)"
    E = w_var.shape[0]
    M = B * L
    out_dtype = jnp.dtype(out_dtype or var.dtype)
    compute_dtype = jnp.promote_types(var.dtype, w_var.dtype)
    c_isz = jnp.dtype(compute_dtype).itemsize
    o_isz = out_dtype.itemsize

    # ---- tile sizing with honest double-buffered VMEM accounting ----------
    LANE = 128
    E_lanes = ((E + LANE - 1) // LANE) * LANE      # lane padding of E in VMEM
    # resident (8,E) weights + (1,E)->8-sublane-padded f32 bias, x2 buffers
    fixed_bytes = 2 * 8 * E_lanes * c_isz + 2 * 8 * E_lanes * 4
    # per M-row: input block is lane-padded to (tm, 128) in VMEM; + output block
    per_row = 2 * (LANE * c_isz + E_lanes * o_isz)
    cap = max(8, ((vmem_budget_bytes - fixed_bytes) // per_row) // 8 * 8)
    tm = min(int(tile_m), cap)
    if M <= tm:
        tm = M                        # single block; full-extent dim is legal
    else:
        tm = max(8, (tm // 8) * 8)    # (8,128) rule for non-full blocks
    grid_m = pl.cdiv(M, tm)           # ragged last block is masked by Pallas

    vmem_limit = int(min(
        fixed_bytes + 2 * tm * (LANE * c_isz + E_lanes * o_isz) + (8 << 20),
        60 << 20))                    # stays under v7x's 64 MiB physical VMEM

    # ---- pack inputs: one (M, 8) array, cols [var, time, val, 0...] -------
    x_packed = jnp.concatenate(
        [var.reshape(M, 1).astype(compute_dtype),
         time.reshape(M, 1).astype(compute_dtype),
         val.reshape(M, 1).astype(compute_dtype),
         jnp.zeros((M, _K_PACK - 3), compute_dtype)], axis=1)

    # ---- pack weights: one resident (8, E) array ---------------------------
    w_packed = jnp.concatenate(
        [w_var.T.astype(compute_dtype),
         w_time.T.astype(compute_dtype),
         w_val.T.astype(compute_dtype),
         jnp.zeros((_K_PACK - 3, E), compute_dtype)], axis=0)

    # Fused bias kept in f32 and added after the dot (never rounded to bf16).
    b_sum = (b_var.astype(jnp.float32) + b_time.astype(jnp.float32)
             + b_val.astype(jnp.float32)).reshape(1, E)

    out = pl.pallas_call(
        _init_triplet_kernel,
        out_shape=jax.ShapeDtypeStruct((M, E), out_dtype),
        grid_spec=pltpu.PrefetchScalarGridSpec(
            num_scalar_prefetch=0,
            grid=(grid_m,),
            in_specs=[
                pl.BlockSpec((tm, _K_PACK), lambda i: (i, 0)),   # packed inputs
                pl.BlockSpec((_K_PACK, E), lambda i: (0, 0)),    # resident W
                pl.BlockSpec((1, E), lambda i: (0, 0)),          # resident bias
            ],
            out_specs=pl.BlockSpec((tm, E), lambda i: (i, 0)),
        ),
        compiler_params=pltpu.CompilerParams(
            dimension_semantics=("parallel",),
            vmem_limit_bytes=vmem_limit),
    )(x_packed, w_packed, b_sum)

    # (M, E) -> (B, L, E) is a contiguous reshape: metadata only, no copy.
    return out.reshape(B, L, E)


def init_triplet_ref(var, time, val, w_var, b_var, w_time, b_time, w_val, b_val):
    """Pure-JAX reference mirroring nn.Linear(1, E) semantics."""
    return (var @ w_var.T + b_var
            + time @ w_time.T + b_time
            + val @ w_val.T + b_val)


if __name__ == "__main__":
    B, L, E = 2, 8, 768  # module default embed_dim=768

    key = jax.random.PRNGKey(0)
    keys = jax.random.split(key, 9)

    # nn.Linear(1, E): weight (E, 1), bias (E,)
    w_var = jax.random.normal(keys[0], (E, 1), jnp.float32)
    b_var = jax.random.normal(keys[1], (E,), jnp.float32)
    w_time = jax.random.normal(keys[2], (E, 1), jnp.float32)
    b_time = jax.random.normal(keys[3], (E,), jnp.float32)
    w_val = jax.random.normal(keys[4], (E, 1), jnp.float32)
    b_val = jax.random.normal(keys[5], (E,), jnp.float32)

    var = jax.random.normal(keys[6], (B, L, 1), jnp.float32)
    time = jax.random.normal(keys[7], (B, L, 1), jnp.float32)
    val = jax.random.normal(keys[8], (B, L, 1), jnp.float32)

    ref = init_triplet_ref(var, time, val,
                           w_var, b_var, w_time, b_time, w_val, b_val)

    # f32 output path
    out = init_triplet(var, time, val,
                       w_var, b_var, w_time, b_time, w_val, b_val)
    out = jax.block_until_ready(out)
    assert out.shape == (B, L, E)
    assert jnp.allclose(out, ref, atol=1e-5, rtol=1e-5), "f32 mismatch vs reference"

    # bf16 output path (main HBM-write lever); accumulation stays f32.
    out_bf16 = init_triplet(var, time, val,
                            w_var, b_var, w_time, b_time, w_val, b_val,
                            out_dtype=jnp.bfloat16)
    out_bf16 = jax.block_until_ready(out_bf16)
    assert out_bf16.dtype == jnp.bfloat16
    assert jnp.allclose(out_bf16.astype(jnp.float32), ref, atol=5e-2, rtol=5e-2), \
        "bf16 mismatch vs reference"

    print("KERNEL_OK")
</pallas_src>

<mosaic_0001>
module attributes {stable_mosaic.version = 11 : i64} {
  func.func @_init_triplet_kernel(%arg0: i32, %arg1: memref<16x8xf32, #tpu.memory_space<vmem>>, %arg2: memref<8x768xf32, #tpu.memory_space<vmem>>, %arg3: memref<1x768xf32, #tpu.memory_space<vmem>>, %arg4: memref<16x768xf32, #tpu.memory_space<vmem>>) attributes {dimension_semantics = [#tpu.dimension_semantics<parallel>], iteration_bounds = array<i64: 1>, scalar_prefetch = 0 : i64, scratch_operands = 0 : i64, tpu.core_type = #tpu.core_type<tc>, window_params = [{transform_indices = @transform_0, window_bounds = array<i64: 16, 8>}, {pipeline_mode = #tpu.pipeline_mode<synchronous>, transform_indices = @transform_1, window_bounds = array<i64: 8, 768>}, {pipeline_mode = #tpu.pipeline_mode<synchronous>, transform_indices = @transform_2, window_bounds = array<i64: 1, 768>}, {transform_indices = @transform_3, window_bounds = array<i64: 16, 768>}]} {
    %c0 = arith.constant 0 : index
    %c0_0 = arith.constant 0 : index
    %0 = vector.load %arg1[%c0, %c0_0] : memref<16x8xf32, #tpu.memory_space<vmem>>, vector<16x8xf32>
    %c0_1 = arith.constant 0 : index
    %c0_2 = arith.constant 0 : index
    %1 = vector.load %arg2[%c0_1, %c0_2] : memref<8x768xf32, #tpu.memory_space<vmem>>, vector<8x768xf32>
    %cst = arith.constant dense<0.000000e+00> : vector<16x768xf32>
    %2 = tpu.matmul %0, %1, %cst {dimension_numbers = #tpu.dot_dimension_numbers<[1], [0], [0], [1], [0, 0, 1, 1], [], []>} : vector<16x8xf32>, vector<8x768xf32>, vector<16x768xf32> -> vector<16x768xf32>
    %c0_3 = arith.constant 0 : index
    %c0_4 = arith.constant 0 : index
    %3 = vector.load %arg3[%c0_3, %c0_4] : memref<1x768xf32, #tpu.memory_space<vmem>>, vector<1x768xf32>
    %4 = vector.broadcast %3 : vector<1x768xf32> to vector<16x768xf32>
    %5 = arith.addf %2, %4 : vector<16x768xf32>
    %c0_5 = arith.constant 0 : index
    %c0_6 = arith.constant 0 : index
    %6 = vector.load %arg4[%c0_5, %c0_6] : memref<16x768xf32, #tpu.memory_space<vmem>>, vector<16x768xf32>
    tpu.vector_store %arg4[%c0_5, %c0_6], %5 {strides = array<i32>} : memref<16x768xf32, #tpu.memory_space<vmem>>, vector<16x768xf32>,
    return
  }
  func.func @transform_0(%arg0: i32) -> (i32, i32) {
    %c0_i32 = arith.constant 0 : i32
    %c0_i32_0 = arith.constant 0 : i32
    return %arg0, %c0_i32 : i32, i32
  }
  func.func @transform_1(%arg0: i32) -> (i32, i32) {
    %c0_i32 = arith.constant 0 : i32
    %c0_i32_0 = arith.constant 0 : i32
    %c0_i32_1 = arith.constant 0 : i32
    return %c0_i32, %c0_i32_0 : i32, i32
  }
  func.func @transform_2(%arg0: i32) -> (i32, i32) {
    %c0_i32 = arith.constant 0 : i32
    %c0_i32_0 = arith.constant 0 : i32
    %c0_i32_1 = arith.constant 0 : i32
    return %c0_i32, %c0_i32_0 : i32, i32
  }
  func.func @transform_3(%arg0: i32) -> (i32, i32) {
    %c0_i32 = arith.constant 0 : i32
    %c0_i32_0 = arith.constant 0 : i32
    return %arg0, %c0_i32 : i32, i32
  }
}

</mosaic_0001>

<llo_original>
// kernel: tpu_custom_call.1
$region0: #{tpu_custom_call.1}
  #allocation0 [shape = 'u32[]', space=smem, size = 0x4, offset = 0x4, fixed_abs, tag = 'smem constant byte address 0x4 - core index']
  #allocation1 [shape = 'u32[144,128]{1,0:T(1,128)}', space=vmem, size = 0x12000, scoped, tag = 'internal scratch']
  %s0 = inlined_call_operand.vmem [shape: f32[16,8], index: 0, kind: input, shape index: {}]
  %s1 = inlined_call_operand.hbm [shape: f32[8,768], index: 1, kind: input, shape index: {}]
  %s2 = inlined_call_operand.vmem [shape: f32[1,768], index: 2, kind: input, shape index: {}]
  %s3 = inlined_call_operand.hbm [shape: f32[16,768], index: 3, kind: output, shape index: {}]
  %s4 = sld [smem:[#allocation0]]
  $region26: #{tpu_custom_call.1} parent=0
    _
  %s6 = ssub.s32 1, %s4
  %s7 = scalar_select 0, %s6, %s4
  $region1: #{tpu_custom_call.1} parent=0
    #allocation2 [shape = 'u8[24576]{0}', space=vmem, size = 0x6000, scoped, tag = 'input window, operand 1, single buffered']
    #allocation3 [shape = 's32[1]{0}', space=sflag, size = 0x4, scoped, tag = 'scoped memory for tpu_custom_call.1']
    #allocation4 [shape = 's32[1]{0}', space=sflag, size = 0x4, scoped, tag = 'scoped memory for tpu_custom_call.1']
    #allocation5 [shape = 'u8[49152]{0}', space=vmem, size = 0xc000, scoped, tag = 'output window, operand 0, single buffered']
    %8 = vsyncpa [#allocation3], 0
    %9 = vsyncpa [#allocation4], 0
    // Predicated region
    $region2: #{tpu_custom_call.1} parent=1 // pred_check
      _
    $region3: #{tpu_custom_call.1} parent=1 // pred_check_branch
      %11 = sbr.rel (0) target = $region5
    $region4: #{tpu_custom_call.1} parent=1 // pred_region
      _
    $region5: #{tpu_custom_call.1} parent=1 // pred_fallthru
      _
    // Predicated region
    $region6: #{tpu_custom_call.1} parent=1 // pred_check
      _
    $region7: #{tpu_custom_call.1} parent=1 // pred_check_branch
      %13 = sbr.rel (0) target = $region9
    $region8: #{tpu_custom_call.1} parent=1 // pred_region
      %s15 = ssub.s32 768, 768
      %16 = vsyncadd [#allocation3], %s15
      %s18 = sshll.u32 [#allocation2], 4
      %s19 = int_to_ptr.vmem [resolvable:$true] %s18
      %21 = dma.hbm_to_vmem [thread:$0]  %s1, 768, %s19, [#allocation3]
    $region9: #{tpu_custom_call.1} parent=1 // pred_fallthru
      _
    // Predicated region
    $region10: #{tpu_custom_call.1} parent=1 // pred_check
      _
    $region11: #{tpu_custom_call.1} parent=1 // pred_check_branch
      %23 = sbr.rel (0) target = $region13
    $region12: #{tpu_custom_call.1} parent=1 // pred_region
      _
    $region13: #{tpu_custom_call.1} parent=1 // pred_fallthru
      _
    // Predicated region
    $region14: #{tpu_custom_call.1} parent=1 // pred_check
      _
    $region15: #{tpu_custom_call.1} parent=1 // pred_check_branch
      %25 = sbr.rel (0) target = $region17
    $region16: #{tpu_custom_call.1} parent=1 // pred_region
      %26 = dma.done [#allocation3], 768
    $region17: #{tpu_custom_call.1} parent=1 // pred_fallthru
      _
    %v27 = vld [vmem:[%s0] sm:$0xff]
    %v28 = vld [vmem:[%s0 + $0x8] sm:$0xff]
    %v29 = vld [vmem:[#allocation2] sm:$0xff]
    %v30 = vld [vmem:[#allocation2 + $0x8] sm:$0xff]
    %v31 = vld [vmem:[#allocation2 + $0x10] sm:$0xff]
    %v32 = vld [vmem:[#allocation2 + $0x18] sm:$0xff]
    %v33 = vld [vmem:[#allocation2 + $0x20] sm:$0xff]
    %v34 = vld [vmem:[#allocation2 + $0x28] sm:$0xff]
    %v35 = vld [vmem:[%s2] sm:$0x3f]
    %v37 = vlaneseq
    %v38 = vshrl.u32 %v37, 7
    %v39 = vsub.s32 0, %v38
    %v40 = vrot.slane %v35, %v39
    %v41 = vlaneseq
    %v42 = vshrl.u32 %v41, 7
    %v43 = vsub.s32 1, %v42
    %v44 = vrot.slane %v35, %v43
    %v45 = vlaneseq
    %v46 = vshrl.u32 %v45, 7
    %v47 = vsub.s32 2, %v46
    %v48 = vrot.slane %v35, %v47
    %v49 = vlaneseq
    %v50 = vshrl.u32 %v49, 7
    %v51 = vsub.s32 3, %v50
    %v52 = vrot.slane %v35, %v51
    %v53 = vlaneseq
    %v54 = vshrl.u32 %v53, 7
    %v55 = vsub.s32 4, %v54
    %v56 = vrot.slane %v35, %v55
    %v57 = vlaneseq
    %v58 = vshrl.u32 %v57, 7
    %v59 = vsub.s32 5, %v58
    %v60 = vrot.slane %v35, %v59
    %vm67 = vcmask 64512
    %v69 = vsel %vm67, %v27, 0
    %v72 = vsel %vm67, %v28, 0
    %74 = vmatprep.subr.mxu0 0.0
    %75 = vmatpush1.msra.mxu0 0.0
    %76 = vmatprep.subr.mxu0 0.0
    %77 = vmatpush1.msra.mxu0 0.0
    %78 = vmatprep.subr.mxu0 0.0
    %79 = vmatpush1.msra.mxu0 0.0
    %80 = vmatprep.subr.mxu0 0.0
    %81 = vmatpush1.msra.mxu0 0.0
    %82 = vmatprep.subr.mxu0 0.0
    %83 = vmatpush1.msra.mxu0 0.0
    %84 = vmatprep.subr.mxu0 0.0
    %85 = vmatpush1.msra.mxu0 0.0
    %86 = vmatprep.subr.mxu0 0.0
    %87 = vmatpush1.msra.mxu0 0.0
    %88 = vmatprep.subr.mxu0 0.0
    %89 = vmatpush1.msra.mxu0 0.0
    %90 = vmatprep.subr.mxu0 0.0
    %91 = vmatpush1.msra.mxu0 0.0
    %92 = vmatprep.subr.mxu0 0.0
    %93 = vmatpush1.msra.mxu0 0.0
    %94 = vmatprep.subr.mxu0 0.0
    %95 = vmatpush1.msra.mxu0 0.0
    %96 = vmatprep.subr.mxu0 0.0
    %97 = vmatpush1.msra.mxu0 0.0
    %98 = vmatprep.subr.mxu0 0.0
    %99 = vmatpush1.msra.mxu0 0.0
    %100 = vmatprep.subr.mxu0 0.0
    %101 = vmatpush1.msra.mxu0 0.0
    %102 = vmatprep.subr.mxu0 0.0
    %103 = vmatpush1.msra.mxu0 0.0
    %104 = vmatprep.subr.mxu0 %v30
    %105 = vmatpush1.msra.mxu0 %v29
    %106 = vmatprep.subr.mxu0 0.0
    %107 = vmatpush2.msra.mxu0 0.0
    %108 = vmatprep.subr.mxu0 0.0
    %109 = vmatpush2.msra.mxu0 0.0
    %110 = vmatprep.subr.mxu0 0.0
    %111 = vmatpush2.msra.mxu0 0.0
    %112 = vmatprep.subr.mxu0 0.0
    %113 = vmatpush2.msra.mxu0 0.0
    %114 = vmatprep.subr.mxu0 0.0
    %115 = vmatpush2.msra.mxu0 0.0
    %116 = vmatprep.subr.mxu0 0.0
    %117 = vmatpush2.msra.mxu0 0.0
    %118 = vmatprep.subr.mxu0 0.0
    %119 = vmatpush2.msra.mxu0 0.0
    %120 = vmatprep.subr.mxu0 0.0
    %121 = vmatpush2.msra.mxu0 0.0
    %122 = vmatprep.subr.mxu0 0.0
    %123 = vmatpush2.msra.mxu0 0.0
    %124 = vmatprep.subr.mxu0 0.0
    %125 = vmatpush2.msra.mxu0 0.0
    %126 = vmatprep.subr.mxu0 0.0
    %127 = vmatpush2.msra.mxu0 0.0
    %128 = vmatprep.subr.mxu0 0.0
    %129 = vmatpush2.msra.mxu0 0.0
    %130 = vmatprep.subr.mxu0 0.0
    %131 = vmatpush2.msra.mxu0 0.0
    %132 = vmatprep.subr.mxu0 0.0
    %133 = vmatpush2.msra.mxu0 0.0
    %134 = vmatprep.subr.mxu0 0.0
    %135 = vmatpush2.msra.mxu0 0.0
    %136 = vmatprep.subr.mxu0 0.0
    %137 = vmatpush2.msra.mxu0 0.0
    %138 = vmatprep.mubr.f32.mxu0 0.0
    %139 = vmatmul.mubr.f32.gmra.mxu0 %v69
    %v140 = vpop.f32.mrf.mxu0
    %v141 = vadd.f32 %v40, %v140
    %v142 = vpop.f32.mrf.mxu0
    %v143 = vadd.f32 %v44, %v142
    %144 = vmatprep.mubr.f32.mxu0 0.0
    %145 = vmatmul.mubr.f32.gmra.mxu0 %v72
    %v146 = vpop.f32.mrf.mxu0
    %v147 = vadd.f32 %v40, %v146
    %v148 = vpop.f32.mrf.mxu0
    %v149 = vadd.f32 %v44, %v148
    %150 = vdwg.mxu0
    %151 = vmatprep.subr.mxu0 0.0
    %152 = vmatpush1.msra.mxu0 0.0
    %153 = vmatprep.subr.mxu0 0.0
    %154 = vmatpush1.msra.mxu0 0.0
    %155 = vmatprep.subr.mxu0 0.0
    %156 = vmatpush1.msra.mxu0 0.0
    %157 = vmatprep.subr.mxu0 0.0
    %158 = vmatpush1.msra.mxu0 0.0
    %159 = vmatprep.subr.mxu0 0.0
    %160 = vmatpush1.msra.mxu0 0.0
    %161 = vmatprep.subr.mxu0 0.0
    %162 = vmatpush1.msra.mxu0 0.0
    %163 = vmatprep.subr.mxu0 0.0
    %164 = vmatpush1.msra.mxu0 0.0
    %165 = vmatprep.subr.mxu0 0.0
    %166 = vmatpush1.msra.mxu0 0.0
    %167 = vmatprep.subr.mxu0 0.0
    %168 = vmatpush1.msra.mxu0 0.0
    %169 = vmatprep.subr.mxu0 0.0
    %170 = vmatpush1.msra.mxu0 0.0
    %171 = vmatprep.subr.mxu0 0.0
    %172 = vmatpush1.msra.mxu0 0.0
    %173 = vmatprep.subr.mxu0 0.0
    %174 = vmatpush1.msra.mxu0 0.0
    %175 = vmatprep.subr.mxu0 0.0
    %176 = vmatpush1.msra.mxu0 0.0
    %177 = vmatprep.subr.mxu0 0.0
    %178 = vmatpush1.msra.mxu0 0.0
    %179 = vmatprep.subr.mxu0 0.0
    %180 = vmatpush1.msra.mxu0 0.0
    %181 = vmatprep.subr.mxu0 %v32
    %182 = vmatpush1.msra.mxu0 %v31
    %183 = vmatprep.subr.mxu0 0.0
    %184 = vmatpush2.msra.mxu0 0.0
    %185 = vmatprep.subr.mxu0 0.0
    %186 = vmatpush2.msra.mxu0 0.0
    %187 = vmatprep.subr.mxu0 0.0
    %188 = vmatpush2.msra.mxu0 0.0
    %189 = vmatprep.subr.mxu0 0.0
    %190 = vmatpush2.msra.mxu0 0.0
    %191 = vmatprep.subr.mxu0 0.0
    %192 = vmatpush2.msra.mxu0 0.0
    %193 = vmatprep.subr.mxu0 0.0
    %194 = vmatpush2.msra.mxu0 0.0
    %195 = vmatprep.subr.mxu0 0.0
    %196 = vmatpush2.msra.mxu0 0.0
    %197 = vmatprep.subr.mxu0 0.0
    %198 = vmatpush2.msra.mxu0 0.0
    %199 = vmatprep.subr.mxu0 0.0
    %200 = vmatpush2.msra.mxu0 0.0
    %201 = vmatprep.subr.mxu0 0.0
    %202 = vmatpush2.msra.mxu0 0.0
    %203 = vmatprep.subr.mxu0 0.0
    %204 = vmatpush2.msra.mxu0 0.0
    %205 = vmatprep.subr.mxu0 0.0
    %206 = vmatpush2.msra.mxu0 0.0
    %207 = vmatprep.subr.mxu0 0.0
    %208 = vmatpush2.msra.mxu0 0.0
    %209 = vmatprep.subr.mxu0 0.0
    %210 = vmatpush2.msra.mxu0 0.0
    %211 = vmatprep.subr.mxu0 0.0
    %212 = vmatpush2.msra.mxu0 0.0
    %213 = vmatprep.subr.mxu0 0.0
    %214 = vmatpush2.msra.mxu0 0.0
    %215 = vmatprep.mubr.f32.mxu0 0.0
    %216 = vmatmul.mubr.f32.gmra.mxu0 %v69
    %v217 = vpop.f32.mrf.mxu0
    %v218 = vadd.f32 %v48, %v217
    %v219 = vpop.f32.mrf.mxu0
    %v220 = vadd.f32 %v52, %v219
    %221 = vmatprep.mubr.f32.mxu0 0.0
    %222 = vmatmul.mubr.f32.gmra.mxu0 %v72
    %v223 = vpop.f32.mrf.mxu0
    %v224 = vadd.f32 %v48, %v223
    %v225 = vpop.f32.mrf.mxu0
    %v226 = vadd.f32 %v52, %v225
    %227 = vdwg.mxu0
    %228 = vmatprep.subr.mxu0 0.0
    %229 = vmatpush1.msra.mxu0 0.0
    %230 = vmatprep.subr.mxu0 0.0
    %231 = vmatpush1.msra.mxu0 0.0
    %232 = vmatprep.subr.mxu0 0.0
    %233 = vmatpush1.msra.mxu0 0.0
    %234 = vmatprep.subr.mxu0 0.0
    %235 = vmatpush1.msra.mxu0 0.0
    %236 = vmatprep.subr.mxu0 0.0
    %237 = vmatpush1.msra.mxu0 0.0
    %238 = vmatprep.subr.mxu0 0.0
    %239 = vmatpush1.msra.mxu0 0.0
    %240 = vmatprep.subr.mxu0 0.0
    %241 = vmatpush1.msra.mxu0 0.0
    %242 = vmatprep.subr.mxu0 0.0
    %243 = vmatpush1.msra.mxu0 0.0
    %244 = vmatprep.subr.mxu0 0.0
    %245 = vmatpush1.msra.mxu0 0.0
    %246 = vmatprep.subr.mxu0 0.0
    %247 = vmatpush1.msra.mxu0 0.0
    %248 = vmatprep.subr.mxu0 0.0
    %249 = vmatpush1.msra.mxu0 0.0
    %250 = vmatprep.subr.mxu0 0.0
    %251 = vmatpush1.msra.mxu0 0.0
    %252 = vmatprep.subr.mxu0 0.0
    %253 = vmatpush1.msra.mxu0 0.0
    %254 = vmatprep.subr.mxu0 0.0
    %255 = vmatpush1.msra.mxu0 0.0
    %256 = vmatprep.subr.mxu0 0.0
    %257 = vmatpush1.msra.mxu0 0.0
    %258 = vmatprep.subr.mxu0 %v34
    %259 = vmatpush1.msra.mxu0 %v33
    %260 = vmatprep.subr.mxu0 0.0
    %261 = vmatpush2.msra.mxu0 0.0
    %262 = vmatprep.subr.mxu0 0.0
    %263 = vmatpush2.msra.mxu0 0.0
    %264 = vmatprep.subr.mxu0 0.0
    %265 = vmatpush2.msra.mxu0 0.0
    %266 = vmatprep.subr.mxu0 0.0
    %267 = vmatpush2.msra.mxu0 0.0
    %268 = vmatprep.subr.mxu0 0.0
    %269 = vmatpush2.msra.mxu0 0.0
    %270 = vmatprep.subr.mxu0 0.0
    %271 = vmatpush2.msra.mxu0 0.0
    %272 = vmatprep.subr.mxu0 0.0
    %273 = vmatpush2.msra.mxu0 0.0
    %274 = vmatprep.subr.mxu0 0.0
    %275 = vmatpush2.msra.mxu0 0.0
    %276 = vmatprep.subr.mxu0 0.0
    %277 = vmatpush2.msra.mxu0 0.0
    %278 = vmatprep.subr.mxu0 0.0
    %279 = vmatpush2.msra.mxu0 0.0
    %280 = vmatprep.subr.mxu0 0.0
    %281 = vmatpush2.msra.mxu0 0.0
    %282 = vmatprep.subr.mxu0 0.0
    %283 = vmatpush2.msra.mxu0 0.0
    %284 = vmatprep.subr.mxu0 0.0
    %285 = vmatpush2.msra.mxu0 0.0
    %286 = vmatprep.subr.mxu0 0.0
    %287 = vmatpush2.msra.mxu0 0.0
    %288 = vmatprep.subr.mxu0 0.0
    %289 = vmatpush2.msra.mxu0 0.0
    %290 = vmatprep.subr.mxu0 0.0
    %291 = vmatpush2.msra.mxu0 0.0
    %292 = vmatprep.mubr.f32.mxu0 0.0
    %293 = vmatmul.mubr.f32.gmra.mxu0 %v69
    %v294 = vpop.f32.mrf.mxu0
    %v295 = vadd.f32 %v56, %v294
    %v296 = vpop.f32.mrf.mxu0
    %v297 = vadd.f32 %v60, %v296
    %298 = vmatprep.mubr.f32.mxu0 0.0
    %299 = vmatmul.mubr.f32.gmra.mxu0 %v72
    %v300 = vpop.f32.mrf.mxu0
    %v301 = vadd.f32 %v56, %v300
    %v302 = vpop.f32.mrf.mxu0
    %v303 = vadd.f32 %v60, %v302
    %304 = vdwg.mxu0
    %305 = vst [vmem:[#allocation5] sm:$0xff] %v141
    %306 = vst [vmem:[#allocation5 + $0x8] sm:$0xff] %v143
    %307 = vst [vmem:[#allocation5 + $0x10] sm:$0xff] %v218
    %308 = vst [vmem:[#allocation5 + $0x18] sm:$0xff] %v220
    %309 = vst [vmem:[#allocation5 + $0x20] sm:$0xff] %v295
    %310 = vst [vmem:[#allocation5 + $0x28] sm:$0xff] %v297
    %311 = vst [vmem:[#allocation5 + $0x30] sm:$0xff] %v147
    %312 = vst [vmem:[#allocation5 + $0x38] sm:$0xff] %v149
    %313 = vst [vmem:[#allocation5 + $0x40] sm:$0xff] %v224
    %314 = vst [vmem:[#allocation5 + $0x48] sm:$0xff] %v226
    %315 = vst [vmem:[#allocation5 + $0x50] sm:$0xff] %v301
    %316 = vst [vmem:[#allocation5 + $0x58] sm:$0xff] %v303
    // Predicated region
    $region18: #{tpu_custom_call.1} parent=1 // pred_check
      _
    $region19: #{tpu_custom_call.1} parent=1 // pred_check_branch
      %318 = sbr.rel (0) target = $region21
    $region20: #{tpu_custom_call.1} parent=1 // pred_region
      %s320 = ssub.s32 1536, 1536
      %321 = vsyncadd [#allocation4], %s320
      %s322 = sshll.u32 [#allocation5], 4
      %s323 = int_to_ptr.vmem [resolvable:$true] %s322
      %328 = dma.vmem_to_hbm [thread:$0]  %s323, 1536, %s3, [#allocation4], 768, 768, 48
    $region21: #{tpu_custom_call.1} parent=1 // pred_fallthru
      _
    // Predicated region
    $region22: #{tpu_custom_call.1} parent=1 // pred_check
      _
    $region23: #{tpu_custom_call.1} parent=1 // pred_check_branch
      %330 = sbr.rel (0) target = $region25
    $region24: #{tpu_custom_call.1} parent=1 // pred_region
      %331 = dma.done [#allocation4], 1536
    $region25: #{tpu_custom_call.1} parent=1 // pred_fallthru
      _
    %332 = vsyncpa [#allocation3], 1
    %333 = vsyncpa [#allocation4], 1

</llo_original>
